<compile_context>
chip_gen: v7x
topology: tpu7x:2x2x1
jax: 0.10.0
libtpu: 0.0.40
codegen_flags: <defaults>
</compile_context>

<pallas_src>
import jax
import jax.numpy as jnp
from jax.experimental import pallas as pl
from jax.experimental.pallas import tpu as pltpu


def _channel2token_kernel(x_ref, o_ref):
    # x_ref / o_ref: (1, C, T) with T = H*W.  Straight lane-dense copy.
    o_ref[...] = x_ref[...]


def channel2token(x):
    """Pallas Channel2Token.forward: (B, C, H, W) -> (B, C, H*W)."""
    B, C, H, W = x.shape
    T = H * W
    # Metadata-only row-major view; the Pallas kernel below moves the data.
    xt = x.reshape(B, C, T)
    return pl.pallas_call(
        _channel2token_kernel,
        out_shape=jax.ShapeDtypeStruct((B, C, T), x.dtype),
        grid=(B,),
        in_specs=[pl.BlockSpec((1, C, T), lambda b: (b, 0, 0))],
        out_specs=pl.BlockSpec((1, C, T), lambda b: (b, 0, 0)),
        compiler_params=pltpu.CompilerParams(
            dimension_semantics=("parallel",),
        ),
    )(xt)


if __name__ == "__main__":
    root = jax.random.PRNGKey(0)
    k1, k2 = jax.random.split(root)

    # Small shape consistent with the module (batch=2, channels=4, spatial=16).
    x = jax.random.normal(k1, (2, 4, 16, 16), jnp.float32)
    out = jax.jit(channel2token)(x)
    jax.block_until_ready(out)
    assert out.shape == (2, 4, 256), out.shape
    assert bool(jnp.array_equal(out, x.reshape(2, 4, -1)))

    # Second config mirroring the attention branch of the parent model
    # (att_c=25 channels, 4x4 spatial -> 16 tokens; non-128-multiple lane dim).
    x2 = jax.random.normal(k2, (2, 25, 4, 4), jnp.float32)
    out2 = jax.jit(channel2token)(x2)
    jax.block_until_ready(out2)
    assert out2.shape == (2, 25, 16), out2.shape
    assert bool(jnp.array_equal(out2, x2.reshape(2, 25, -1)))

    print("KERNEL_OK")
</pallas_src>

<mosaic_0001>
module attributes {stable_mosaic.version = 11 : i64} {
  func.func @_channel2token_kernel(%arg0: i32, %arg1: memref<1x4x256xf32, #tpu.memory_space<vmem>>, %arg2: memref<1x4x256xf32, #tpu.memory_space<vmem>>) attributes {dimension_semantics = [#tpu.dimension_semantics<parallel>], iteration_bounds = array<i64: 2>, scalar_prefetch = 0 : i64, scratch_operands = 0 : i64, tpu.core_type = #tpu.core_type<tc>, window_params = [{transform_indices = @transform_0, window_bounds = array<i64: 1, 4, 256>}, {transform_indices = @transform_1, window_bounds = array<i64: 1, 4, 256>}]} {
    %c0 = arith.constant 0 : index
    %c0_0 = arith.constant 0 : index
    %c0_1 = arith.constant 0 : index
    %0 = vector.load %arg1[%c0, %c0_0, %c0_1] : memref<1x4x256xf32, #tpu.memory_space<vmem>>, vector<1x4x256xf32>
    %c0_2 = arith.constant 0 : index
    %c0_3 = arith.constant 0 : index
    %c0_4 = arith.constant 0 : index
    %1 = vector.load %arg2[%c0_2, %c0_3, %c0_4] : memref<1x4x256xf32, #tpu.memory_space<vmem>>, vector<1x4x256xf32>
    tpu.vector_store %arg2[%c0_2, %c0_3, %c0_4], %0 {strides = array<i32>} : memref<1x4x256xf32, #tpu.memory_space<vmem>>, vector<1x4x256xf32>,
    return
  }
  func.func @transform_0(%arg0: i32) -> (i32, i32, i32) {
    %c0_i32 = arith.constant 0 : i32
    %c0_i32_0 = arith.constant 0 : i32
    %c0_i32_1 = arith.constant 0 : i32
    return %arg0, %c0_i32, %c0_i32_0 : i32, i32, i32
  }
  func.func @transform_1(%arg0: i32) -> (i32, i32, i32) {
    %c0_i32 = arith.constant 0 : i32
    %c0_i32_0 = arith.constant 0 : i32
    %c0_i32_1 = arith.constant 0 : i32
    return %arg0, %c0_i32, %c0_i32_0 : i32, i32, i32
  }
}

</mosaic_0001>

<llo_original>
// kernel: channel2token.1
$region0: #{channel2token.1}
  #allocation0 [shape = 'u32[]', space=smem, size = 0x4, offset = 0x4, fixed_abs, tag = 'smem constant byte address 0x4 - core index']
  #allocation1 [shape = 'u32[144,128]{1,0:T(1,128)}', space=vmem, size = 0x12000, scoped, tag = 'internal scratch']
  %s0 = inlined_call_operand.vmem [shape: f32[2,4,256], index: 0, kind: input, shape index: {}]
  %s1 = inlined_call_operand.hbm [shape: f32[2,4,256], index: 1, kind: output, shape index: {}]
  %s2 = sld [smem:[#allocation0]]
  $region37: #{channel2token.1} parent=0
    _
  %s4 = ssub.s32 1, %s2
  %s5 = scalar_select 0, %s4, %s2
  $region1: #{channel2token.1} parent=0
    #allocation2 [shape = 'u8[8192]{0}', space=vmem, size = 0x2000, scoped, tag = 'output window, operand 0']
    #allocation3 [shape = 's32[2]{0}', space=sflag, size = 0x8, scoped, tag = 'scoped memory for channel2token.1']
    %6 = vsyncpa [#allocation3], 0
    %s7 = scalar_lea.sflag [#allocation3], 1
    %8 = vsyncpa %s7, 0
    loop: start=0, step=1, limit=4
    $region2: #{channel2token.1} parent=1 // loop_pre_header
      _
    $region3: #{channel2token.1} parent=1 // loop_header
      %s10 = sphi 0, %s14
      %p11 = scmp.ge.s32.totalorder %s10, 4
      %s20 = sphi 0, %s22
      %s23 = sphi 0, %s20
      %s24 = sphi 0, %s23
      %s40 = sphi 0, %s24
      %s46 = sphi 0, %s48
      %s49 = sphi 0, %s46
      %s50 = sphi 0, %s49
      %s66 = sphi 0, %s50
    $region4: #{channel2token.1} parent=1 // loop_header_branch
      %13 = sbr.rel (%p11) target = $region8
    $region5: #{channel2token.1} parent=1 // loop_body
      %s15 = ssub.s32 %s10, 1
      %s16 = ssub.s32 %s10, 2
      %s17 = sadd.s32 %s10, 1
      %s18 = ssub.s32 %s10, %s17
      %p19 = scmp.eq.s32.totalorder %s18, 0
      %s21 = sadd.s32 %s20, 1
      %s22 = scalar_select %p19, %s20, %s21
      %p25 = pneg %p19
      %p26 = scmp.eq.s32.totalorder %s10, 1
      %p27 = por %p25, %p26
      %p28 = scmp.ne.s32.totalorder %s20, %s23
      %p29 = scmp.eq.s32.totalorder %s10, 0
      %p30 = por %p28, %p29
      %p31 = scmp.ne.s32.totalorder %s20, %s23
      %p32 = scmp.eq.s32.totalorder %s15, 1
      %p33 = por %p31, %p32
      %p34 = scmp.ne.s32.totalorder %s23, %s24
      %p35 = scmp.eq.s32.totalorder %s15, 0
      %p36 = por %p34, %p35
      %p37 = scmp.ne.s32.totalorder %s23, %s24
      %p38 = scmp.eq.s32.totalorder %s16, 1
      %p39 = por %p37, %p38
      %p41 = scmp.ne.s32.totalorder %s24, %s40
      %p42 = scmp.eq.s32.totalorder %s16, 0
      %p43 = por %p41, %p42
      %s44 = ssub.s32 %s10, %s17
      %p45 = scmp.eq.s32.totalorder %s44, 0
      %s47 = sadd.s32 %s46, 1
      %s48 = scalar_select %p45, %s46, %s47
      %p51 = pneg %p45
      %p52 = scmp.eq.s32.totalorder %s10, 1
      %p53 = por %p51, %p52
      %p54 = scmp.ne.s32.totalorder %s46, %s49
      %p55 = scmp.eq.s32.totalorder %s10, 0
      %p56 = por %p54, %p55
      %p57 = scmp.ne.s32.totalorder %s46, %s49
      %p58 = scmp.eq.s32.totalorder %s15, 1
      %p59 = por %p57, %p58
      %p60 = scmp.ne.s32.totalorder %s49, %s50
      %p61 = scmp.eq.s32.totalorder %s15, 0
      %p62 = por %p60, %p61
      %p63 = scmp.ne.s32.totalorder %s49, %s50
      %p64 = scmp.eq.s32.totalorder %s16, 1
      %p65 = por %p63, %p64
      %p67 = scmp.ne.s32.totalorder %s50, %s66
      %p68 = scmp.eq.s32.totalorder %s16, 0
      %p69 = por %p67, %p68
      %p70 = scmp.le.s32.totalorder 1, %s10
      %p71 = scmp.lt.s32.totalorder %s10, 3
      %p72 = pnand %p70, %p71
      %p73 = pneg %p72
      // Predicated region
      $region9: #{channel2token.1} parent=5 // pred_check
        _
      $region10: #{channel2token.1} parent=5 // pred_check_branch
        %75 = sbr.rel (%p72) target = $region12
      $region11: #{channel2token.1} parent=5 // pred_region
        %s76 = ssub.s32 %s10, 1
      $region12: #{channel2token.1} parent=5 // pred_fallthru
        _
      %p77 = scmp.lt.s32.totalorder %s10, 2
      // Predicated region
      $region13: #{channel2token.1} parent=5 // pred_check
        %p78 = pneg %p77
      $region14: #{channel2token.1} parent=5 // pred_check_branch
        %80 = sbr.rel (%p78) target = $region16
      $region15: #{channel2token.1} parent=5 // pred_region
        // Predicated region
        $region17: #{channel2token.1} parent=15 // pred_check
          %p81 = pneg %p30
        $region18: #{channel2token.1} parent=15 // pred_check_branch
          %83 = sbr.rel (%p81) target = $region20
        $region19: #{channel2token.1} parent=15 // pred_region
          %p84 = scmp.lt.s32.totalorder %s10, 1
          %s85 = scalar_select %p84, %s10, 1
          %s86 = smul.addr %s85, 2
          %s87 = smul.addr %s86, 4
          %s88 = scalar_lea.vmem %s0, %s87
        $region20: #{channel2token.1} parent=15 // pred_fallthru
          _
      $region16: #{channel2token.1} parent=5 // pred_fallthru
        _
      %p89 = scmp.le.s32.totalorder 1, %s10
      %p90 = scmp.lt.s32.totalorder %s10, 3
      %p91 = pnand %p89, %p90
      %p92 = pneg %p91
      // Predicated region
      $region21: #{channel2token.1} parent=5 // pred_check
        _
      $region22: #{channel2token.1} parent=5 // pred_check_branch
        %94 = sbr.rel (%p91) target = $region24
      $region23: #{channel2token.1} parent=5 // pred_region
        %s95 = ssub.s32 %s10, 1
        %p96 = scmp.lt.s32.totalorder %s15, 1
        %s97 = scalar_select %p96, %s15, 1
        %s98 = smul.addr %s97, 2
        %s99 = smul.addr %s98, 4
        %s100 = scalar_lea.vmem %s0, %s99
        %p101 = pneg %p36
        %p102 = pneg %p33
        %p103 = pneg %p62
        %p104 = pneg %p59
        %s105 = sand.u32 %s49, 1
        %s106 = scalar_lea.sflag [#allocation3], %s105
        %s107 = sand.u32 %s49, 1
        %s108 = smul.addr %s107, 8
        %s109 = scalar_lea.vmem [#allocation2], %s108
        %p110 = scmp.lt.s32.totalorder %s15, 1
        %s111 = scalar_select %p110, %s15, 1
        %s112 = smul.addr %s111, 2
        %s113 = smul.addr %s112, 4
        %s114 = scalar_lea.vmem %s0, %s113
        %v115 = vld [vmem:[%s114] sm:$0xff]
        %116 = vst [vmem:[%s109] sm:$0xff] %v115
        %s117 = sand.u32 %s49, 1
        %s118 = scalar_lea.sflag [#allocation3], %s117
        %s119 = sand.u32 %s49, 1
        %s120 = smul.addr %s119, 8
        %s121 = scalar_lea.vmem [#allocation2], %s120
        // Predicated region
        $region25: #{channel2token.1} parent=23 // pred_check
          %p122 = pneg %p59
        $region26: #{channel2token.1} parent=23 // pred_check_branch
          %124 = sbr.rel (%p122) target = $region28
        $region27: #{channel2token.1} parent=23 // pred_region
          %s126 = ssub.s32 128, 128
          %127 = vsyncadd %s118, %s126
          %s128 = smul.addr %s15, 2
          %s129 = smul.addr %s128, 64
          %s130 = scalar_lea.hbm %s1, %s129
          %s132 = sshll.u32 %s121, 4
          %s133 = int_to_ptr.vmem [resolvable:$true] %s132
          %135 = dma.vmem_to_hbm [thread:$0]  %s133, 128, %s130, %s118
        $region28: #{channel2token.1} parent=23 // pred_fallthru
          _
      $region24: #{channel2token.1} parent=5 // pred_fallthru
        _
      %p136 = scmp.le.s32.totalorder 2, %s10
      // Predicated region
      $region29: #{channel2token.1} parent=5 // pred_check
        %p137 = pneg %p136
      $region30: #{channel2token.1} parent=5 // pred_check_branch
        %139 = sbr.rel (%p137) target = $region32
      $region31: #{channel2token.1} parent=5 // pred_region
        %s140 = ssub.s32 %s10, 2
        // Predicated region
        $region33: #{channel2token.1} parent=31 // pred_check
          %p141 = pneg %p65
        $region34: #{channel2token.1} parent=31 // pred_check_branch
          %143 = sbr.rel (%p141) target = $region36
        $region35: #{channel2token.1} parent=31 // pred_region
          %s144 = sand.u32 %s50, 1
          %s145 = scalar_lea.sflag [#allocation3], %s144
          %s146 = sand.u32 %s50, 1
          %s147 = smul.addr %s146, 8
          %s148 = scalar_lea.vmem [#allocation2], %s147
          %149 = dma.done %s145, 128
        $region36: #{channel2token.1} parent=31 // pred_fallthru
          _
      $region32: #{channel2token.1} parent=5 // pred_fallthru
        _
    $region6: #{channel2token.1} parent=1 // loop_footer
      %s14 = sadd.s32 1, %s10
    $region7: #{channel2token.1} parent=1 // loop_footer_branch
      %9 = sbr.rel target = $region3
    $region8: #{channel2token.1} parent=1 // loop_exit
      _
    %150 = vsyncpa [#allocation3], 1
    %s151 = scalar_lea.sflag [#allocation3], 1
    %152 = vsyncpa %s151, 1

</llo_original>
